<compile_context>
chip_gen: v6e
topology: v6e:2x2x1
jax: 0.10.0
libtpu: 0.0.40
codegen_flags: <defaults>
</compile_context>

<pallas_src>
import functools

import jax
import jax.numpy as jnp
from jax import lax
from jax.experimental import pallas as pl
from jax.experimental.pallas import tpu as pltpu


def _ctx_band_kernel(n_cls, n_ctx, tc, emb_hbm_ref, ctx_ref, out_hbm_ref,
                     slab_ref, sem_ref):
    """Write ctx into rows [1, 1+n_ctx) of every class row of out_hbm_ref.

    emb_hbm_ref: (n_cls, L, D) HBM, aliased to out_hbm_ref (never read here).
    ctx_ref:     (n_ctx, D)    VMEM-resident learned context.
    out_hbm_ref: (n_cls, L, D) HBM output (same buffer as emb_hbm_ref).
    slab_ref:    (tc, n_ctx, D) VMEM scratch: ctx broadcast over one class tile.
    sem_ref:     DMA completion semaphore.
    """
    del emb_hbm_ref  # Same buffer as out_hbm_ref; prefix/suffix rows untouched.

    tc_, n_ctx_, d = slab_ref.shape
    # Fill the broadcast slab exactly once; it is read-only for all DMAs below.
    slab_ref[...] = jnp.broadcast_to(ctx_ref[...][None, :, :], (tc_, n_ctx_, d))

    n_full = n_cls // tc
    rem = n_cls - n_full * tc

    def copy_tile(start, rows):
        # rows is a static Python int; start may be dynamic.
        src = slab_ref if rows == tc else slab_ref.at[:rows]
        dst = out_hbm_ref.at[pl.ds(start, rows), pl.ds(1, n_ctx), :]
        cp = pltpu.make_async_copy(src, dst, sem_ref)
        cp.start()
        cp.wait()

    if n_full == 1:
        copy_tile(0, tc)
    elif n_full > 1:
        def body(t, carry):
            copy_tile(t * tc, tc)
            return carry
        lax.fori_loop(0, n_full, body, 0)
    if rem > 0:
        copy_tile(n_full * tc, rem)


def prompt_learner_forward(embedding, ctx, *, n_ctx=None,
                           class_tile_bytes=8 * 1024 * 1024):
    """PromptLearner.forward() ('end', learned_cls=False, batch_size=None).

    embedding: (n_cls, L, D) frozen token embedding of the tokenized prompts
               (row 0 = SOS/prefix, rows 1..1+n_ctx = placeholder ctx tokens,
               rest = classname + EOS + padding = suffix).
    ctx:       (n_ctx, D) learnable context vectors.
    returns:   (n_cls, L, D) prompts == cat([prefix, ctx, suffix], dim=-2),
               i.e. `embedding` with rows 1..1+n_ctx replaced by ctx.

    For zero-copy operation donate the embedding buffer at the jit boundary
    (jax.jit(..., donate_argnums=(0,))).  For very small n_cls the pure-JAX
    reference (prompt_learner_forward_ref) fused by XLA may be preferable.
    """
    n_cls, L, D = embedding.shape
    if ctx.ndim != 2:
        # TODO(synk): batch_size != None path (ctx.dim()==3) not implemented.
        raise NotImplementedError(
            "only the ctx.dim()==2 ('end', learned_cls=False) path is implemented")
    if n_ctx is None:
        n_ctx = ctx.shape[0]
    assert ctx.shape == (n_ctx, D), (ctx.shape, n_ctx, D)
    assert 1 + n_ctx <= L, (n_ctx, L)

    out_dtype = embedding.dtype
    ctx = ctx.astype(out_dtype)          # single wrapper-side cast; kernel has none
    itemsize = jnp.dtype(out_dtype).itemsize

    # Classes per DMA tile: one slab DMA writes tc * n_ctx * D elements.
    bytes_per_class = n_ctx * D * itemsize
    tc = int(max(1, min(n_cls, class_tile_bytes // bytes_per_class)))

    # Bandwidth-bound: read ctx once, write only the ctx band of every class.
    cost = pl.CostEstimate(
        flops=0, transcendentals=0,
        bytes_accessed=int((n_cls + 1) * n_ctx * D * itemsize))

    kernel = functools.partial(_ctx_band_kernel, n_cls, n_ctx, tc)

    return pl.pallas_call(
        kernel,
        out_shape=jax.ShapeDtypeStruct((n_cls, L, D), out_dtype),
        in_specs=[
            pl.BlockSpec(memory_space=pl.ANY),                  # embedding (aliased, stays in HBM)
            pl.BlockSpec(memory_space=pltpu.MemorySpace.VMEM),  # ctx, VMEM-resident
        ],
        out_specs=pl.BlockSpec(memory_space=pl.ANY),
        scratch_shapes=[
            pltpu.VMEM((tc, n_ctx, D), out_dtype),              # broadcast slab
            pltpu.SemaphoreType.DMA(()),
        ],
        input_output_aliases={0: 0},                            # donate embedding -> output
        compiler_params=pltpu.CompilerParams(
            vmem_limit_bytes=32 * 1024 * 1024,                  # safe on v5e/v6e/v7x
        ),
        cost_estimate=cost,
    )(embedding, ctx)


def prompt_learner_forward_ref(token_prefix, ctx, token_suffix):
    """Pure-JAX reference mirroring the PyTorch forward (ctx.dim()==2, 'end')."""
    n_cls = token_prefix.shape[0]
    ctx = ctx.astype(token_prefix.dtype)
    ctx_e = jnp.broadcast_to(ctx[None, :, :], (n_cls,) + ctx.shape)
    return jnp.concatenate([token_prefix, ctx_e, token_suffix], axis=1)


if __name__ == "__main__":
    # Small shapes consistent with the module: n_cls classes, n_ctx learnable
    # context tokens, ctx_dim embedding width (multiple of 128), context_length
    # tokens -> suffix length = context_length - 1 - n_ctx.
    n_cls = 16
    n_ctx = 8
    ctx_dim = 128
    context_length = 32

    key = jax.random.PRNGKey(0)
    k_ctx, k_emb = jax.random.split(key)

    # Deterministic "parameters": ctx ~ N(0, 0.02) like nn.init.normal_(std=0.02);
    # `embedding` stands in for the frozen token_embedding(tokenized_prompts).
    ctx = (0.02 * jax.random.normal(k_ctx, (n_ctx, ctx_dim))).astype(jnp.float32)
    embedding = jax.random.normal(
        k_emb, (n_cls, context_length, ctx_dim)).astype(jnp.float32)

    emb_dtype = embedding.dtype
    token_prefix = embedding[:, :1, :]            # (n_cls, 1, D)
    token_suffix = embedding[:, 1 + n_ctx:, :]    # (n_cls, L-1-n_ctx, D)
    ref = jax.block_until_ready(
        prompt_learner_forward_ref(token_prefix, ctx, token_suffix))

    # Donate the embedding buffer so the kernel's input/output alias is honored
    # in-place (no defensive copy).
    fwd = jax.jit(prompt_learner_forward,
                  static_argnames=("n_ctx", "class_tile_bytes"),
                  donate_argnums=(0,))
    prompts = jax.block_until_ready(fwd(embedding, ctx, n_ctx=n_ctx))

    assert prompts.shape == (n_cls, context_length, ctx_dim), prompts.shape
    assert prompts.dtype == emb_dtype
    assert jnp.allclose(prompts, ref), "mismatch vs reference"

    print("KERNEL_OK")
</pallas_src>

<mosaic_0001>
module attributes {stable_mosaic.version = 11 : i64} {
  func.func @_ctx_band_kernel(%arg0: memref<16x32x128xf32, #tpu.memory_space<any>>, %arg1: memref<8x128xf32, #tpu.memory_space<vmem>>, %arg2: memref<16x32x128xf32, #tpu.memory_space<any>>, %arg3: memref<16x8x128xf32, #tpu.memory_space<vmem>>, %arg4: memref<!tpu.dma_semaphore, #tpu.memory_space<semaphore_mem>>) attributes {dimension_semantics = [], scalar_prefetch = 0 : i64, scratch_operands = 2 : i64, tpu.core_type = #tpu.core_type<tc>} {
    %c0 = arith.constant 0 : index
    %c0_0 = arith.constant 0 : index
    %0 = vector.load %arg1[%c0, %c0_0] : memref<8x128xf32, #tpu.memory_space<vmem>>, vector<8x128xf32>
    %1 = vector.shape_cast %0 : vector<8x128xf32> to vector<1x8x128xf32>
    %2 = vector.shape_cast %1 : vector<1x8x128xf32> to vector<1x8x128xf32>
    %3 = vector.broadcast %2 : vector<1x8x128xf32> to vector<16x8x128xf32>
    %c0_1 = arith.constant 0 : index
    %c0_2 = arith.constant 0 : index
    %c0_3 = arith.constant 0 : index
    %4 = vector.load %arg3[%c0_1, %c0_2, %c0_3] : memref<16x8x128xf32, #tpu.memory_space<vmem>>, vector<16x8x128xf32>
    tpu.vector_store %arg3[%c0_1, %c0_2, %c0_3], %3 {strides = array<i32>} : memref<16x8x128xf32, #tpu.memory_space<vmem>>, vector<16x8x128xf32>,
    %c0_i32 = arith.constant 0 : i32
    %c1_i32 = arith.constant 1 : i32
    %c0_i32_4 = arith.constant 0 : i32
    %5 = tpu.memref_slice %arg2[%c0_i32, %c1_i32, %c0_i32_4] : memref<16x32x128xf32, #tpu.memory_space<any>> -> memref<16x8x128xf32, #tpu.memory_space<any>>
    tpu.enqueue_dma source(%arg3 : memref<16x8x128xf32, #tpu.memory_space<vmem>>) target(%5 : memref<16x8x128xf32, #tpu.memory_space<any>>) target_semaphore(%arg4 : memref<!tpu.dma_semaphore, #tpu.memory_space<semaphore_mem>>)
    %c0_i32_5 = arith.constant 0 : i32
    %c1_i32_6 = arith.constant 1 : i32
    %c0_i32_7 = arith.constant 0 : i32
    %6 = tpu.memref_slice %arg2[%c0_i32_5, %c1_i32_6, %c0_i32_7] : memref<16x32x128xf32, #tpu.memory_space<any>> -> memref<16x8x128xf32, #tpu.memory_space<any>>
    tpu.wait_dma2 semaphore(%arg4 : memref<!tpu.dma_semaphore, #tpu.memory_space<semaphore_mem>>) src(%arg3 : memref<16x8x128xf32, #tpu.memory_space<vmem>>) dst(%6 : memref<16x8x128xf32, #tpu.memory_space<any>>)
    return
  }
}

</mosaic_0001>

<llo_original>
// kernel: prompt_learner_forward.1
$region0: #{prompt_learner_forward.1}
  #allocation0 [shape = 'u32[]', space=smem, size = 0x4, offset = 0x4, fixed_abs, tag = 'smem constant byte address 0x4 - core index']
  #allocation1 [shape = 'u32[144,128]{1,0:T(1,128)}', space=vmem, size = 0x12000, scoped, tag = 'internal scratch']
  #allocation2 [shape = 'f32[16,8,128]{2,1,0:T(8,128)}', space=vmem, size = 0x10000, scoped, tag = 'scratch operand']
  #allocation3 [shape = 's32[1]{0}', space=sflag, size = 0x4, scoped, tag = 'scratch operand']
  #allocation6 [shape = 's32[]', space=sflag, size = 0x4, offset = 0, fixed_abs, tag = 'sflag constant byte address 0x0 - dummy sync flag']
  %s0 = inlined_call_operand.hbm [shape: f32[16,32,128], index: 0, kind: input, shape index: {}, may-alias: {0,2}]
  %s1 = inlined_call_operand.hbm [shape: f32[8,128], index: 1, kind: input, shape index: {}]
  %s2 = inlined_call_operand.hbm [shape: f32[16,32,128], index: 2, kind: output, shape index: {}, may-alias: {0,2}]
  %s3 = sld [smem:[#allocation0]]
  $region10: #{prompt_learner_forward.1} parent=0
    _
  %s5 = ssub.s32 1, %s3
  %s6 = scalar_select 0, %s5, %s3
  $region1: #{prompt_learner_forward.1} parent=0
    #allocation4 [shape = 'u8[4096]{0}', space=vmem, size = 0x1000, scoped, tag = 'input window, operand 1, single buffered']
    #allocation5 [shape = 's32[1]{0}', space=sflag, size = 0x4, scoped, tag = 'scoped memory for prompt_learner_forward.1']
    %7 = vsyncpa [#allocation5], 0
    // Predicated region
    $region2: #{prompt_learner_forward.1} parent=1 // pred_check
      _
    $region3: #{prompt_learner_forward.1} parent=1 // pred_check_branch
      %9 = sbr.rel (0) target = $region5
    $region4: #{prompt_learner_forward.1} parent=1 // pred_region
      %s11 = ssub.s32 128, 128
      %12 = vsyncadd [#allocation5], %s11
      %s14 = sshll.u32 [#allocation4], 4
      %s15 = int_to_ptr.vmem [resolvable:$true] %s14
      %17 = dma.hbm_to_vmem [thread:$0]  %s1, 128, %s15, [#allocation5]
    $region5: #{prompt_learner_forward.1} parent=1 // pred_fallthru
      _
    // Predicated region
    $region6: #{prompt_learner_forward.1} parent=1 // pred_check
      _
    $region7: #{prompt_learner_forward.1} parent=1 // pred_check_branch
      %19 = sbr.rel (0) target = $region9
    $region8: #{prompt_learner_forward.1} parent=1 // pred_region
      %20 = dma.done [#allocation5], 128
    $region9: #{prompt_learner_forward.1} parent=1 // pred_fallthru
      _
    %v21 = vld [vmem:[#allocation4] sm:$0xff]
    %22 = vst [vmem:[#allocation2] sm:$0xff] %v21
    %23 = vst [vmem:[#allocation2 + $0x8] sm:$0xff] %v21
    %24 = vst [vmem:[#allocation2 + $0x10] sm:$0xff] %v21
    %25 = vst [vmem:[#allocation2 + $0x18] sm:$0xff] %v21
    %26 = vst [vmem:[#allocation2 + $0x20] sm:$0xff] %v21
    %27 = vst [vmem:[#allocation2 + $0x28] sm:$0xff] %v21
    %28 = vst [vmem:[#allocation2 + $0x30] sm:$0xff] %v21
    %29 = vst [vmem:[#allocation2 + $0x38] sm:$0xff] %v21
    %30 = vst [vmem:[#allocation2 + $0x40] sm:$0xff] %v21
    %31 = vst [vmem:[#allocation2 + $0x48] sm:$0xff] %v21
    %32 = vst [vmem:[#allocation2 + $0x50] sm:$0xff] %v21
    %33 = vst [vmem:[#allocation2 + $0x58] sm:$0xff] %v21
    %34 = vst [vmem:[#allocation2 + $0x60] sm:$0xff] %v21
    %35 = vst [vmem:[#allocation2 + $0x68] sm:$0xff] %v21
    %36 = vst [vmem:[#allocation2 + $0x70] sm:$0xff] %v21
    %37 = vst [vmem:[#allocation2 + $0x78] sm:$0xff] %v21
    %s38 = scalar_lea.hbm %s2, 16
    %s40 = sshll.u32 [#allocation2], 4
    %s41 = int_to_ptr.vmem [resolvable:$true] %s40
    %43 = dma.vmem_to_hbm [thread:$0]  %s41, 2048, %s38, [#allocation3], 128, 512, 8
    %s44 = smul.u32 16, 8
    %s45 = smul.u32 %s44, 1
    %s46 = sshll.u32 %s45, 4
    %47 = dma.done [#allocation3], %s46
    %48 = vsyncpa [#allocation5], 1
  %49 = vsyncmov [#allocation3]
  %s50 = vpop.sfrf %49
  %p51 = scmp.eq.s32.totalorder %s50, 0
  %p52 = pneg %p51
  %54 = shalt.err (%p52)

</llo_original>
